<compile_context>
chip_gen: v7x
topology: tpu7x:2x2x1
jax: 0.10.0
libtpu: 0.0.40
codegen_flags: <defaults>
</compile_context>

<pallas_src>
import jax
import jax.numpy as jnp
from jax.experimental import pallas as pl
from jax.experimental.pallas import tpu as pltpu


def _round_up(a, b):
    return (a + b - 1) // b * b


# ----------------------------- kernels ------------------------------------- #

def _resnet_kernel_shortcut(x_ref, w0_ref, b0_ref, ws_ref, w1_ref, b1_ref, o_ref):
    x = x_ref[...]                                              # (tm, size_in)
    # net = fc_0(relu(x)), f32 accumulation
    h = jnp.dot(jnp.maximum(x, 0).astype(w0_ref.dtype), w0_ref[...],
                preferred_element_type=jnp.float32) + b0_ref[...]
    # out = shortcut(x) + fc_1(relu(net))  -- two accumulating dots, no concat
    out = jnp.dot(x.astype(ws_ref.dtype), ws_ref[...],
                  preferred_element_type=jnp.float32)
    out += jnp.dot(jnp.maximum(h, 0.0).astype(w1_ref.dtype), w1_ref[...],
                   preferred_element_type=jnp.float32)
    out += b1_ref[...]
    o_ref[...] = out.astype(o_ref.dtype)


def _resnet_kernel_identity(x_ref, w0_ref, b0_ref, w1_ref, b1_ref, o_ref):
    x = x_ref[...]                                              # (tm, size_in == size_out)
    h = jnp.dot(jnp.maximum(x, 0).astype(w0_ref.dtype), w0_ref[...],
                preferred_element_type=jnp.float32) + b0_ref[...]
    dx = jnp.dot(jnp.maximum(h, 0.0).astype(w1_ref.dtype), w1_ref[...],
                 preferred_element_type=jnp.float32) + b1_ref[...]
    # identity shortcut: residual add of the already-resident x tile
    o_ref[...] = (dx + x.astype(jnp.float32)).astype(o_ref.dtype)


# ------------------------- one-time weight prep ----------------------------- #

def prepare_params(w0, b0, w1, b1, ws=None, *, compute_dtype=jnp.bfloat16):
    """One-time padding / casting of weights (hoisted out of the per-call path).

    Weights are stored transposed vs. PyTorch: (in, out), so the kernel computes
    x @ W (== nn.Linear's x @ W.T).  ws=None means the identity shortcut
    (size_in == size_out).
    """
    size_in, size_h = w0.shape
    size_out = w1.shape[1]
    kh_p = _round_up(size_h, 128)
    identity = ws is None
    if identity:
        assert size_in == size_out, "identity shortcut requires size_in == size_out"
        nout_p = size_out                       # residual add needs matching width
    else:
        nout_p = _round_up(size_out, 128)       # lane-dense output store

    w0_p = jnp.pad(w0, ((0, 0), (0, kh_p - size_h))).astype(compute_dtype)
    b0_p = jnp.pad(b0.reshape(1, size_h),
                   ((0, 0), (0, kh_p - size_h))).astype(jnp.float32)
    w1_p = jnp.pad(w1, ((0, kh_p - size_h), (0, nout_p - size_out))).astype(compute_dtype)
    b1_p = jnp.pad(b1.reshape(1, size_out),
                   ((0, 0), (0, nout_p - size_out))).astype(jnp.float32)
    ws_p = None if identity else jnp.pad(
        ws, ((0, 0), (0, nout_p - size_out))).astype(compute_dtype)

    return dict(w0=w0_p, b0=b0_p, w1=w1_p, b1=b1_p, ws=ws_p,
                size_in=size_in, size_h=size_h, size_out=size_out,
                nout_p=nout_p, compute_dtype=compute_dtype)


# ------------------------------- wrapper ------------------------------------ #

def resnet_block_fc(x, params, *, tm=1024, out_dtype=None):
    """x: (..., size_in) -> (..., size_out). `params` comes from prepare_params."""
    size_in = params["size_in"]
    size_out = params["size_out"]
    nout_p = params["nout_p"]
    assert x.shape[-1] == size_in
    lead = x.shape[:-1]

    xm = x.reshape(-1, size_in)
    if xm.dtype != params["compute_dtype"]:
        # Pass x already in compute dtype (e.g. bf16) to avoid this per-call cast.
        xm = xm.astype(params["compute_dtype"])
    M = xm.shape[0]
    out_dtype = out_dtype or x.dtype

    # Big row tiles amortize the ~0.35us/step pipeline overhead, but cap at
    # ~cdiv(M,2) so the 'parallel' grid axis has >= 2 steps (v7x has 2 TCs).
    tm_cap = _round_up(pl.cdiv(M, 2), 8)
    tm_eff = max(8, min(tm, tm_cap))
    grid = pl.cdiv(M, tm_eff)                   # partial last tile is masked by Pallas

    identity = params["ws"] is None
    if identity:
        kernel = _resnet_kernel_identity
        weight_args = (params["w0"], params["b0"], params["w1"], params["b1"])
    else:
        kernel = _resnet_kernel_shortcut
        weight_args = (params["w0"], params["b0"], params["ws"],
                       params["w1"], params["b1"])

    # Weights/biases: whole-array, grid-invariant, resident in VMEM.
    resident = pl.BlockSpec(memory_space=pltpu.MemorySpace.VMEM)

    # Explicit VMEM budget (resident weights + double-buffered x/out tiles),
    # clamped to 64 MiB so it stays safe on v7x (64 MiB physical per TC).
    resident_bytes = sum(int(a.size) * a.dtype.itemsize for a in weight_args)
    tile_bytes = 2 * tm_eff * (size_in * xm.dtype.itemsize
                               + nout_p * jnp.dtype(out_dtype).itemsize)
    vmem_limit = int(min(max(2 * (resident_bytes + tile_bytes), 32 * 1024 * 1024),
                         64 * 1024 * 1024))
    # TODO(synk): for very large size_h/size_out (resident weights >~20 MiB) tile
    # the output dim with a second grid axis instead of whole-array resident weights.

    out_p = pl.pallas_call(
        kernel,
        out_shape=jax.ShapeDtypeStruct((M, nout_p), out_dtype),
        grid_spec=pltpu.PrefetchScalarGridSpec(
            num_scalar_prefetch=0,
            grid=(grid,),
            in_specs=[pl.BlockSpec((tm_eff, size_in), lambda i: (i, 0))]  # x row tile
                     + [resident] * len(weight_args),
            out_specs=pl.BlockSpec((tm_eff, nout_p), lambda i: (i, 0)),
        ),
        compiler_params=pltpu.CompilerParams(
            dimension_semantics=("parallel",),
            vmem_limit_bytes=vmem_limit),
    )(xm, *weight_args)

    out = out_p if nout_p == size_out else out_p[:, :size_out]
    return out.reshape(*lead, size_out)


# ------------------------- init / reference / test -------------------------- #

def init_params(key, size_in, size_h, size_out, dtype=jnp.float32):
    """Deterministic init mirroring nn.Linear defaults, with fc_1.weight zeroed
    exactly as in ResnetBlockFC.__init__."""
    k0w, k0b, k1b, ksw = jax.random.split(key, 4)

    def uniform(k, shape, fan_in):
        bound = float(fan_in) ** -0.5
        return jax.random.uniform(k, shape, dtype, minval=-bound, maxval=bound)

    w0 = uniform(k0w, (size_in, size_h), size_in)      # stored (in, out) == torch weight.T
    b0 = uniform(k0b, (size_h,), size_in)
    w1 = jnp.zeros((size_h, size_out), dtype)          # nn.init.zeros_(fc_1.weight)
    b1 = uniform(k1b, (size_out,), size_h)
    ws = uniform(ksw, (size_in, size_out), size_in)    # shortcut, no bias
    return w0, b0, w1, b1, ws


def reference(x, w0, b0, w1, b1, ws):
    net = jnp.maximum(x, 0.0) @ w0 + b0.reshape(-1)
    dx = jnp.maximum(net, 0.0) @ w1 + b1.reshape(-1)
    return x @ ws + dx


if __name__ == "__main__":
    size_in, size_h, size_out = 32, 64, 48   # size_in != size_out -> linear shortcut
    batch, points = 2, 64                    # flattened rows M = 128

    key = jax.random.PRNGKey(0)
    kx, kp, kw1 = jax.random.split(key, 3)
    x = jax.random.normal(kx, (batch, points, size_in), jnp.float32)
    w0, b0, w1, b1, ws = init_params(kp, size_in, size_h, size_out)

    # 1) f32 compute, module-default init (fc_1.weight == 0): exact check.
    p32 = prepare_params(w0, b0, w1, b1, ws, compute_dtype=jnp.float32)
    out = jax.block_until_ready(resnet_block_fc(x, p32))
    ref = reference(x, w0, b0, w1, b1, ws)
    assert out.shape == (batch, points, size_out)
    assert jnp.allclose(out, ref, atol=1e-5, rtol=1e-5), "mismatch (f32, zero fc_1)"

    # 2) bf16 compute path (perf config), non-zero fc_1 weight.
    w1b = 0.05 * jax.random.normal(kw1, (size_h, size_out), jnp.float32)
    pbf = prepare_params(w0, b0, w1b, b1, ws, compute_dtype=jnp.bfloat16)
    x_bf = x.astype(jnp.bfloat16)            # cast once, outside the per-call path
    out2 = jax.block_until_ready(resnet_block_fc(x_bf, pbf))

    def _rb(a):                               # bf16-rounded inputs for a fair reference
        return a.astype(jnp.bfloat16).astype(jnp.float32)
    ref2 = reference(_rb(x), _rb(w0), b0, _rb(w1b), b1, _rb(ws))
    assert jnp.allclose(out2.astype(jnp.float32), ref2, atol=5e-2, rtol=5e-2), \
        "mismatch (bf16, dense fc_1)"

    # 3) identity shortcut path (size_in == size_out): in-kernel residual add.
    sz = 64
    w0i, b0i, _, b1i, _ = init_params(jax.random.PRNGKey(1), sz, sz, sz)
    w1i = 0.05 * jax.random.normal(jax.random.PRNGKey(2), (sz, sz), jnp.float32)
    xi = jax.random.normal(jax.random.PRNGKey(3), (batch, points, sz), jnp.float32)
    pid = prepare_params(w0i, b0i, w1i, b1i, None, compute_dtype=jnp.float32)
    out3 = jax.block_until_ready(resnet_block_fc(xi, pid))
    ref3 = reference(xi, w0i, b0i, w1i, b1i, jnp.eye(sz, dtype=jnp.float32))
    assert jnp.allclose(out3, ref3, atol=1e-5, rtol=1e-5), "mismatch (identity shortcut)"

    print("KERNEL_OK")
</pallas_src>

<mosaic_0001>
module attributes {stable_mosaic.version = 11 : i64} {
  func.func @_resnet_kernel_shortcut(%arg0: i32, %arg1: memref<64x32xf32, #tpu.memory_space<vmem>>, %arg2: memref<32x128xf32, #tpu.memory_space<vmem>>, %arg3: memref<1x128xf32, #tpu.memory_space<vmem>>, %arg4: memref<32x128xf32, #tpu.memory_space<vmem>>, %arg5: memref<128x128xf32, #tpu.memory_space<vmem>>, %arg6: memref<1x128xf32, #tpu.memory_space<vmem>>, %arg7: memref<64x128xf32, #tpu.memory_space<vmem>>) attributes {dimension_semantics = [#tpu.dimension_semantics<parallel>], iteration_bounds = array<i64: 2>, scalar_prefetch = 0 : i64, scratch_operands = 0 : i64, tpu.core_type = #tpu.core_type<tc>, window_params = [{transform_indices = @transform_0, window_bounds = array<i64: 64, 32>}, {pipeline_mode = #tpu.pipeline_mode<synchronous>, transform_indices = @transform_1, window_bounds = array<i64: 32, 128>}, {pipeline_mode = #tpu.pipeline_mode<synchronous>, transform_indices = @transform_2, window_bounds = array<i64: 1, 128>}, {pipeline_mode = #tpu.pipeline_mode<synchronous>, transform_indices = @transform_3, window_bounds = array<i64: 32, 128>}, {pipeline_mode = #tpu.pipeline_mode<synchronous>, transform_indices = @transform_4, window_bounds = array<i64: 128, 128>}, {pipeline_mode = #tpu.pipeline_mode<synchronous>, transform_indices = @transform_5, window_bounds = array<i64: 1, 128>}, {transform_indices = @transform_6, window_bounds = array<i64: 64, 128>}]} {
    %c0 = arith.constant 0 : index
    %c0_0 = arith.constant 0 : index
    %0 = vector.load %arg1[%c0, %c0_0] : memref<64x32xf32, #tpu.memory_space<vmem>>, vector<64x32xf32>
    %cst = arith.constant 0.000000e+00 : f32
    %1 = vector.broadcast %cst : f32 to vector<64x32xf32>
    %2 = arith.maximumf %0, %1 : vector<64x32xf32>
    %c0_1 = arith.constant 0 : index
    %c0_2 = arith.constant 0 : index
    %3 = vector.load %arg2[%c0_1, %c0_2] : memref<32x128xf32, #tpu.memory_space<vmem>>, vector<32x128xf32>
    %cst_3 = arith.constant dense<0.000000e+00> : vector<64x128xf32>
    %4 = tpu.matmul %2, %3, %cst_3 {dimension_numbers = #tpu.dot_dimension_numbers<[1], [0], [0], [1], [0, 0, 1, 1], [], []>} : vector<64x32xf32>, vector<32x128xf32>, vector<64x128xf32> -> vector<64x128xf32>
    %c0_4 = arith.constant 0 : index
    %c0_5 = arith.constant 0 : index
    %5 = vector.load %arg3[%c0_4, %c0_5] : memref<1x128xf32, #tpu.memory_space<vmem>>, vector<1x128xf32>
    %6 = vector.broadcast %5 : vector<1x128xf32> to vector<64x128xf32>
    %7 = arith.addf %4, %6 : vector<64x128xf32>
    %c0_6 = arith.constant 0 : index
    %c0_7 = arith.constant 0 : index
    %8 = vector.load %arg4[%c0_6, %c0_7] : memref<32x128xf32, #tpu.memory_space<vmem>>, vector<32x128xf32>
    %cst_8 = arith.constant dense<0.000000e+00> : vector<64x128xf32>
    %9 = tpu.matmul %0, %8, %cst_8 {dimension_numbers = #tpu.dot_dimension_numbers<[1], [0], [0], [1], [0, 0, 1, 1], [], []>} : vector<64x32xf32>, vector<32x128xf32>, vector<64x128xf32> -> vector<64x128xf32>
    %cst_9 = arith.constant 0.000000e+00 : f32
    %10 = vector.broadcast %cst_9 : f32 to vector<64x128xf32>
    %11 = arith.maximumf %7, %10 : vector<64x128xf32>
    %c0_10 = arith.constant 0 : index
    %c0_11 = arith.constant 0 : index
    %12 = vector.load %arg5[%c0_10, %c0_11] : memref<128x128xf32, #tpu.memory_space<vmem>>, vector<128x128xf32>
    %cst_12 = arith.constant dense<0.000000e+00> : vector<64x128xf32>
    %13 = tpu.matmul %11, %12, %cst_12 {dimension_numbers = #tpu.dot_dimension_numbers<[1], [0], [0], [1], [0, 0, 1, 1], [], []>} : vector<64x128xf32>, vector<128x128xf32>, vector<64x128xf32> -> vector<64x128xf32>
    %14 = arith.addf %9, %13 : vector<64x128xf32>
    %c0_13 = arith.constant 0 : index
    %c0_14 = arith.constant 0 : index
    %15 = vector.load %arg6[%c0_13, %c0_14] : memref<1x128xf32, #tpu.memory_space<vmem>>, vector<1x128xf32>
    %16 = vector.broadcast %15 : vector<1x128xf32> to vector<64x128xf32>
    %17 = arith.addf %14, %16 : vector<64x128xf32>
    %c0_15 = arith.constant 0 : index
    %c0_16 = arith.constant 0 : index
    %18 = vector.load %arg7[%c0_15, %c0_16] : memref<64x128xf32, #tpu.memory_space<vmem>>, vector<64x128xf32>
    tpu.vector_store %arg7[%c0_15, %c0_16], %17 {strides = array<i32>} : memref<64x128xf32, #tpu.memory_space<vmem>>, vector<64x128xf32>,
    return
  }
  func.func @transform_0(%arg0: i32) -> (i32, i32) {
    %c0_i32 = arith.constant 0 : i32
    %c0_i32_0 = arith.constant 0 : i32
    return %arg0, %c0_i32 : i32, i32
  }
  func.func @transform_1(%arg0: i32) -> (i32, i32) {
    %c0_i32 = arith.constant 0 : i32
    %c0_i32_0 = arith.constant 0 : i32
    %c0_i32_1 = arith.constant 0 : i32
    return %c0_i32, %c0_i32_0 : i32, i32
  }
  func.func @transform_2(%arg0: i32) -> (i32, i32) {
    %c0_i32 = arith.constant 0 : i32
    %c0_i32_0 = arith.constant 0 : i32
    %c0_i32_1 = arith.constant 0 : i32
    return %c0_i32, %c0_i32_0 : i32, i32
  }
  func.func @transform_3(%arg0: i32) -> (i32, i32) {
    %c0_i32 = arith.constant 0 : i32
    %c0_i32_0 = arith.constant 0 : i32
    %c0_i32_1 = arith.constant 0 : i32
    return %c0_i32, %c0_i32_0 : i32, i32
  }
  func.func @transform_4(%arg0: i32) -> (i32, i32) {
    %c0_i32 = arith.constant 0 : i32
    %c0_i32_0 = arith.constant 0 : i32
    %c0_i32_1 = arith.constant 0 : i32
    return %c0_i32, %c0_i32_0 : i32, i32
  }
  func.func @transform_5(%arg0: i32) -> (i32, i32) {
    %c0_i32 = arith.constant 0 : i32
    %c0_i32_0 = arith.constant 0 : i32
    %c0_i32_1 = arith.constant 0 : i32
    return %c0_i32, %c0_i32_0 : i32, i32
  }
  func.func @transform_6(%arg0: i32) -> (i32, i32) {
    %c0_i32 = arith.constant 0 : i32
    %c0_i32_0 = arith.constant 0 : i32
    return %arg0, %c0_i32 : i32, i32
  }
}

</mosaic_0001>

<llo_original>
// kernel: tpu_custom_call.1
$region0: #{tpu_custom_call.1}
  #allocation0 [shape = 'u32[]', space=smem, size = 0x4, offset = 0x4, fixed_abs, tag = 'smem constant byte address 0x4 - core index']
  #allocation1 [shape = 'u32[144,128]{1,0:T(1,128)}', space=vmem, size = 0x12000, scoped, tag = 'internal scratch']
  %s0 = inlined_call_operand.vmem [shape: f32[128,32], index: 0, kind: input, shape index: {}]
  %s1 = inlined_call_operand.vmem [shape: f32[32,128], index: 1, kind: input, shape index: {}]
  %s2 = inlined_call_operand.vmem [shape: f32[1,128], index: 2, kind: input, shape index: {}]
  %s3 = inlined_call_operand.hbm [shape: f32[32,128], index: 3, kind: input, shape index: {}]
  %s4 = inlined_call_operand.vmem [shape: f32[128,128], index: 4, kind: input, shape index: {}]
  %s5 = inlined_call_operand.vmem [shape: f32[1,128], index: 5, kind: input, shape index: {}]
  %s6 = inlined_call_operand.hbm [shape: f32[128,128], index: 6, kind: output, shape index: {}]
  %s7 = sld [smem:[#allocation0]]
  $region61: #{tpu_custom_call.1} parent=0
    _
  %s9 = ssub.s32 1, %s7
  %s10 = scalar_select 0, %s9, %s7
  $region1: #{tpu_custom_call.1} parent=0
    #allocation2 [shape = 'u8[16384]{0}', space=vmem, size = 0x4000, scoped, tag = 'input window, operand 3, single buffered']
    #allocation3 [shape = 's32[2]{0}', space=sflag, size = 0x8, scoped, tag = 'scoped memory for tpu_custom_call.1']
    #allocation4 [shape = 's32[2]{0}', space=sflag, size = 0x8, scoped, tag = 'scoped memory for tpu_custom_call.1']
    #allocation5 [shape = 'u8[65536]{0}', space=vmem, size = 0x10000, scoped, tag = 'output window, operand 0']
    %11 = vsyncpa [#allocation3], 0
    %12 = vsyncpa [#allocation4], 0
    %s13 = scalar_lea.sflag [#allocation4], 1
    %14 = vsyncpa %s13, 0
    loop: start=0, step=1, limit=4
    $region2: #{tpu_custom_call.1} parent=1 // loop_pre_header
      _
    $region3: #{tpu_custom_call.1} parent=1 // loop_header
      %s16 = sphi 0, %s20
      %p17 = scmp.ge.s32.totalorder %s16, 4
      %s26 = sphi 0, %s28
      %s29 = sphi 0, %s26
      %s30 = sphi 0, %s29
      %s46 = sphi 0, %s30
      %s50 = sphi 0, %s50
      %s52 = sphi 0, %s50
      %s53 = sphi 0, %s52
      %s67 = sphi 0, %s53
      %s71 = sphi 0, %s71
      %s73 = sphi 0, %s71
      %s74 = sphi 0, %s73
      %s88 = sphi 0, %s74
      %s92 = sphi 0, %s92
      %s94 = sphi 0, %s92
      %s95 = sphi 0, %s94
      %s109 = sphi 0, %s95
      %s113 = sphi 0, %s113
      %s115 = sphi 0, %s113
      %s116 = sphi 0, %s115
      %s130 = sphi 0, %s116
      %s134 = sphi 0, %s134
      %s136 = sphi 0, %s134
      %s137 = sphi 0, %s136
      %s151 = sphi 0, %s137
      %s157 = sphi 0, %s159
      %s160 = sphi 0, %s157
      %s161 = sphi 0, %s160
      %s177 = sphi 0, %s161
    $region4: #{tpu_custom_call.1} parent=1 // loop_header_branch
      %19 = sbr.rel (%p17) target = $region8
    $region5: #{tpu_custom_call.1} parent=1 // loop_body
      %s21 = ssub.s32 %s16, 1
      %s22 = ssub.s32 %s16, 2
      %s23 = sadd.s32 %s16, 1
      %s24 = ssub.s32 %s16, %s23
      %p25 = scmp.eq.s32.totalorder %s24, 0
      %s27 = sadd.s32 %s26, 1
      %s28 = scalar_select %p25, %s26, %s27
      %p31 = pneg %p25
      %p32 = scmp.eq.s32.totalorder %s16, 1
      %p33 = por %p31, %p32
      %p34 = scmp.ne.s32.totalorder %s26, %s29
      %p35 = scmp.eq.s32.totalorder %s16, 0
      %p36 = por %p34, %p35
      %p37 = scmp.ne.s32.totalorder %s26, %s29
      %p38 = scmp.eq.s32.totalorder %s21, 1
      %p39 = por %p37, %p38
      %p40 = scmp.ne.s32.totalorder %s29, %s30
      %p41 = scmp.eq.s32.totalorder %s21, 0
      %p42 = por %p40, %p41
      %p43 = scmp.ne.s32.totalorder %s29, %s30
      %p44 = scmp.eq.s32.totalorder %s22, 1
      %p45 = por %p43, %p44
      %p47 = scmp.ne.s32.totalorder %s30, %s46
      %p48 = scmp.eq.s32.totalorder %s22, 0
      %p49 = por %p47, %p48
      %s51 = sadd.s32 %s50, 1
      %p54 = scmp.eq.s32.totalorder %s16, 1
      %p55 = scmp.ne.s32.totalorder %s50, %s52
      %p56 = scmp.eq.s32.totalorder %s16, 0
      %p57 = por %p55, %p56
      %p58 = scmp.ne.s32.totalorder %s50, %s52
      %p59 = scmp.eq.s32.totalorder %s21, 1
      %p60 = por %p58, %p59
      %p61 = scmp.ne.s32.totalorder %s52, %s53
      %p62 = scmp.eq.s32.totalorder %s21, 0
      %p63 = por %p61, %p62
      %p64 = scmp.ne.s32.totalorder %s52, %s53
      %p65 = scmp.eq.s32.totalorder %s22, 1
      %p66 = por %p64, %p65
      %p68 = scmp.ne.s32.totalorder %s53, %s67
      %p69 = scmp.eq.s32.totalorder %s22, 0
      %p70 = por %p68, %p69
      %s72 = sadd.s32 %s71, 1
      %p75 = scmp.eq.s32.totalorder %s16, 1
      %p76 = scmp.ne.s32.totalorder %s71, %s73
      %p77 = scmp.eq.s32.totalorder %s16, 0
      %p78 = por %p76, %p77
      %p79 = scmp.ne.s32.totalorder %s71, %s73
      %p80 = scmp.eq.s32.totalorder %s21, 1
      %p81 = por %p79, %p80
      %p82 = scmp.ne.s32.totalorder %s73, %s74
      %p83 = scmp.eq.s32.totalorder %s21, 0
      %p84 = por %p82, %p83
      %p85 = scmp.ne.s32.totalorder %s73, %s74
      %p86 = scmp.eq.s32.totalorder %s22, 1
      %p87 = por %p85, %p86
      %p89 = scmp.ne.s32.totalorder %s74, %s88
      %p90 = scmp.eq.s32.totalorder %s22, 0
      %p91 = por %p89, %p90
      %s93 = sadd.s32 %s92, 1
      %p96 = scmp.eq.s32.totalorder %s16, 1
      %p97 = scmp.ne.s32.totalorder %s92, %s94
      %p98 = scmp.eq.s32.totalorder %s16, 0
      %p99 = por %p97, %p98
      %p100 = scmp.ne.s32.totalorder %s92, %s94
      %p101 = scmp.eq.s32.totalorder %s21, 1
      %p102 = por %p100, %p101
      %p103 = scmp.ne.s32.totalorder %s94, %s95
      %p104 = scmp.eq.s32.totalorder %s21, 0
      %p105 = por %p103, %p104
      %p106 = scmp.ne.s32.totalorder %s94, %s95
      %p107 = scmp.eq.s32.totalorder %s22, 1
      %p108 = por %p106, %p107
      %p110 = scmp.ne.s32.totalorder %s95, %s109
      %p111 = scmp.eq.s32.totalorder %s22, 0
      %p112 = por %p110, %p111
      %s114 = sadd.s32 %s113, 1
      %p117 = scmp.eq.s32.totalorder %s16, 1
      %p118 = scmp.ne.s32.totalorder %s113, %s115
      %p119 = scmp.eq.s32.totalorder %s16, 0
      %p120 = por %p118, %p119
      %p121 = scmp.ne.s32.totalorder %s113, %s115
      %p122 = scmp.eq.s32.totalorder %s21, 1
      %p123 = por %p121, %p122
      %p124 = scmp.ne.s32.totalorder %s115, %s116
      %p125 = scmp.eq.s32.totalorder %s21, 0
      %p126 = por %p124, %p125
      %p127 = scmp.ne.s32.totalorder %s115, %s116
      %p128 = scmp.eq.s32.totalorder %s22, 1
      %p129 = por %p127, %p128
      %p131 = scmp.ne.s32.totalorder %s116, %s130
      %p132 = scmp.eq.s32.totalorder %s22, 0
      %p133 = por %p131, %p132
      %s135 = sadd.s32 %s134, 1
      %p138 = scmp.eq.s32.totalorder %s16, 1
      %p139 = scmp.ne.s32.totalorder %s134, %s136
      %p140 = scmp.eq.s32.totalorder %s16, 0
      %p141 = por %p139, %p140
      %p142 = scmp.ne.s32.totalorder %s134, %s136
      %p143 = scmp.eq.s32.totalorder %s21, 1
      %p144 = por %p142, %p143
      %p145 = scmp.ne.s32.totalorder %s136, %s137
      %p146 = scmp.eq.s32.totalorder %s21, 0
      %p147 = por %p145, %p146
      %p148 = scmp.ne.s32.totalorder %s136, %s137
      %p149 = scmp.eq.s32.totalorder %s22, 1
      %p150 = por %p148, %p149
      %p152 = scmp.ne.s32.totalorder %s137, %s151
      %p153 = scmp.eq.s32.totalorder %s22, 0
      %p154 = por %p152, %p153
      %s155 = ssub.s32 %s16, %s23
      %p156 = scmp.eq.s32.totalorder %s155, 0
      %s158 = sadd.s32 %s157, 1
      %s159 = scalar_select %p156, %s157, %s158
      %p162 = pneg %p156
      %p163 = scmp.eq.s32.totalorder %s16, 1
      %p164 = por %p162, %p163
      %p165 = scmp.ne.s32.totalorder %s157, %s160
      %p166 = scmp.eq.s32.totalorder %s16, 0
      %p167 = por %p165, %p166
      %p168 = scmp.ne.s32.totalorder %s157, %s160
      %p169 = scmp.eq.s32.totalorder %s21, 1
      %p170 = por %p168, %p169
      %p171 = scmp.ne.s32.totalorder %s160, %s161
      %p172 = scmp.eq.s32.totalorder %s21, 0
      %p173 = por %p171, %p172
      %p174 = scmp.ne.s32.totalorder %s160, %s161
      %p175 = scmp.eq.s32.totalorder %s22, 1
      %p176 = por %p174, %p175
      %p178 = scmp.ne.s32.totalorder %s161, %s177
      %p179 = scmp.eq.s32.totalorder %s22, 0
      %p180 = por %p178, %p179
      %p181 = scmp.le.s32.totalorder 1, %s16
      %p182 = scmp.lt.s32.totalorder %s16, 3
      %p183 = pnand %p181, %p182
      %p184 = pneg %p183
      // Predicated region
      $region9: #{tpu_custom_call.1} parent=5 // pred_check
        _
      $region10: #{tpu_custom_call.1} parent=5 // pred_check_branch
        %186 = sbr.rel (%p183) target = $region12
      $region11: #{tpu_custom_call.1} parent=5 // pred_region
        %s187 = ssub.s32 %s16, 1
        // Predicated region
        $region13: #{tpu_custom_call.1} parent=11 // pred_check
          %p188 = pneg %p63
        $region14: #{tpu_custom_call.1} parent=11 // pred_check_branch
          %190 = sbr.rel (%p188) target = $region16
        $region15: #{tpu_custom_call.1} parent=11 // pred_region
          _
        $region16: #{tpu_custom_call.1} parent=11 // pred_fallthru
          _
        // Predicated region
        $region17: #{tpu_custom_call.1} parent=11 // pred_check
          %p191 = pneg %p84
        $region18: #{tpu_custom_call.1} parent=11 // pred_check_branch
          %193 = sbr.rel (%p191) target = $region20
        $region19: #{tpu_custom_call.1} parent=11 // pred_region
          _
        $region20: #{tpu_custom_call.1} parent=11 // pred_fallthru
          _
        // Predicated region
        $region21: #{tpu_custom_call.1} parent=11 // pred_check
          %p194 = pneg %p105
        $region22: #{tpu_custom_call.1} parent=11 // pred_check_branch
          %196 = sbr.rel (%p194) target = $region24
        $region23: #{tpu_custom_call.1} parent=11 // pred_region
          %s198 = ssub.s32 512, 512
          %199 = vsyncadd [#allocation3], %s198
          %s200 = sshll.u32 [#allocation2], 4
          %s201 = int_to_ptr.vmem [resolvable:$true] %s200
          %206 = dma.hbm_to_vmem [thread:$0]  %s3, 512, %s201, [#allocation3], 128, 128, 8
        $region24: #{tpu_custom_call.1} parent=11 // pred_fallthru
          _
        // Predicated region
        $region25: #{tpu_custom_call.1} parent=11 // pred_check
          %p207 = pneg %p126
        $region26: #{tpu_custom_call.1} parent=11 // pred_check_branch
          %209 = sbr.rel (%p207) target = $region28
        $region27: #{tpu_custom_call.1} parent=11 // pred_region
          _
        $region28: #{tpu_custom_call.1} parent=11 // pred_fallthru
          _
        // Predicated region
        $region29: #{tpu_custom_call.1} parent=11 // pred_check
          %p210 = pneg %p147
        $region30: #{tpu_custom_call.1} parent=11 // pred_check_branch
          %212 = sbr.rel (%p210) target = $region32
        $region31: #{tpu_custom_call.1} parent=11 // pred_region
          _
        $region32: #{tpu_custom_call.1} parent=11 // pred_fallthru
          _
      $region12: #{tpu_custom_call.1} parent=5 // pred_fallthru
        _
      %p213 = scmp.lt.s32.totalorder %s16, 2
      // Predicated region
      $region33: #{tpu_custom_call.1} parent=5 // pred_check
        %p214 = pneg %p213
      $region34: #{tpu_custom_call.1} parent=5 // pred_check_branch
        %216 = sbr.rel (%p214) target = $region36
      $region35: #{tpu_custom_call.1} parent=5 // pred_region
        // Predicated region
        $region37: #{tpu_custom_call.1} parent=35 // pred_check
          %p217 = pneg %p36
        $region38: #{tpu_custom_call.1} parent=35 // pred_check_branch
          %219 = sbr.rel (%p217) target = $region40
        $region39: #{tpu_custom_call.1} parent=35 // pred_region
          %s220 = smul.u32 8, %s16
          %p221 = scmp.lt.s32.totalorder %s220, 15
          %s222 = scalar_select %p221, %s220, 15
          %s223 = smul.addr %s222, 8
          %s224 = scalar_lea.vmem %s0, %s223
          %s225 = smul.u32 8, %s16
        $region40: #{tpu_custom_call.1} parent=35 // pred_fallthru
          _
      $region36: #{tpu_custom_call.1} parent=5 // pred_fallthru
        _
      %p226 = scmp.le.s32.totalorder 1, %s16
      %p227 = scmp.lt.s32.totalorder %s16, 3
      %p228 = pnand %p226, %p227
      %p229 = pneg %p228
      // Predicated region
      $region41: #{tpu_custom_call.1} parent=5 // pred_check
        _
      $region42: #{tpu_custom_call.1} parent=5 // pred_check_branch
        %231 = sbr.rel (%p228) target = $region44
      $region43: #{tpu_custom_call.1} parent=5 // pred_region
        %s232 = ssub.s32 %s16, 1
        // Predicated region
        $region45: #{tpu_custom_call.1} parent=43 // pred_check
          %p233 = pneg %p105
        $region46: #{tpu_custom_call.1} parent=43 // pred_check_branch
          %235 = sbr.rel (%p233) target = $region48
        $region47: #{tpu_custom_call.1} parent=43 // pred_region
          %236 = dma.done [#allocation3], 512
        $region48: #{tpu_custom_call.1} parent=43 // pred_fallthru
          _
        %s237 = smul.u32 8, %s21
        %p238 = scmp.lt.s32.totalorder %s237, 15
        %s239 = scalar_select %p238, %s237, 15
        %s240 = smul.addr %s239, 8
        %s241 = scalar_lea.vmem %s0, %s240
        %p242 = pneg %p42
        %p243 = pneg %p39
        %p244 = pneg %p63
        %p245 = pneg %p60
        %p246 = pneg %p84
        %p247 = pneg %p81
        %p248 = pneg %p105
        %p249 = pneg %p102
        %p250 = pneg %p126
        %p251 = pneg %p123
        %p252 = pneg %p147
        %p253 = pneg %p144
        %p254 = pneg %p173
        %p255 = pneg %p170
        %s256 = sand.u32 %s160, 1
        %s257 = scalar_lea.sflag [#allocation4], %s256
        %s258 = sand.u32 %s160, 1
        %s259 = smul.addr %s258, 64
        %s260 = scalar_lea.vmem [#allocation5], %s259
        %s261 = smul.u32 8, %s21
        %p262 = scmp.lt.s32.totalorder %s261, 15
        %s263 = scalar_select %p262, %s261, 15
        %s264 = smul.addr %s263, 8
        %s265 = scalar_lea.vmem %s0, %s264
        %s266 = smul.u32 8, %s21
        %s267 = smul.u32 8, %s21
        %v268 = vld [vmem:[%s265] sm:$0xff]
        %v269 = vld [vmem:[%s265 + $0x8] sm:$0xff]
        %v270 = vld [vmem:[%s265 + $0x10] sm:$0xff]
        %v271 = vld [vmem:[%s265 + $0x18] sm:$0xff]
        %v272 = vld [vmem:[%s265 + $0x20] sm:$0xff]
        %v273 = vld [vmem:[%s265 + $0x28] sm:$0xff]
        %v274 = vld [vmem:[%s265 + $0x30] sm:$0xff]
        %v275 = vld [vmem:[%s265 + $0x38] sm:$0xff]
        %v276 = vmax.f32 %v268, 0.0
        %v277 = vmax.f32 %v269, 0.0
        %v278 = vmax.f32 %v270, 0.0
        %v279 = vmax.f32 %v271, 0.0
        %v280 = vmax.f32 %v272, 0.0
        %v281 = vmax.f32 %v273, 0.0
        %v282 = vmax.f32 %v274, 0.0
        %v283 = vmax.f32 %v275, 0.0
        %v284 = vld [vmem:[%s1] sm:$0xff]
        %v285 = vld [vmem:[%s1 + $0x8] sm:$0xff]
        %v286 = vld [vmem:[%s1 + $0x10] sm:$0xff]
        %v287 = vld [vmem:[%s1 + $0x18] sm:$0xff]
        %v288 = vld [vmem:[%s2] sm:$0x1]
        %v290 = vlaneseq
        %v291 = vshrl.u32 %v290, 7
        %v292 = vsub.s32 0, %v291
        %v293 = vrot.slane %v288, %v292
        %vm295 = vcmask 261120
        %v297 = vsel %vm295, %v276, 0
        %v300 = vsel %vm295, %v277, 0
        %v303 = vsel %vm295, %v278, 0
        %v306 = vsel %vm295, %v279, 0
        %v309 = vsel %vm295, %v280, 0
        %v312 = vsel %vm295, %v281, 0
        %v315 = vsel %vm295, %v282, 0
        %v318 = vsel %vm295, %v283, 0
        %320 = vmatprep.subr.mxu0 0.0
        %321 = vmatpush1.msra.mxu0 %v284
        %322 = vmatprep.subr.mxu0 0.0
        %323 = vmatpush1.msra.mxu0 %v285
        %324 = vmatprep.subr.mxu0 0.0
        %325 = vmatpush1.msra.mxu0 %v286
        %326 = vmatprep.subr.mxu0 0.0
        %327 = vmatpush1.msra.mxu0 %v287
        %328 = vmatprep.subr.mxu0 0.0
        %329 = vmatpush1.msra.mxu0 0.0
        %330 = vmatprep.subr.mxu0 0.0
        %331 = vmatpush1.msra.mxu0 0.0
        %332 = vmatprep.subr.mxu0 0.0
        %333 = vmatpush1.msra.mxu0 0.0
        %334 = vmatprep.subr.mxu0 0.0
        %335 = vmatpush1.msra.mxu0 0.0
        %336 = vmatprep.subr.mxu0 0.0
        %337 = vmatpush1.msra.mxu0 0.0
        %338 = vmatprep.subr.mxu0 0.0
        %339 = vmatpush1.msra.mxu0 0.0
        %340 = vmatprep.subr.mxu0 0.0
        %341 = vmatpush1.msra.mxu0 0.0
        %342 = vmatprep.subr.mxu0 0.0
        %343 = vmatpush1.msra.mxu0 0.0
        %344 = vmatprep.subr.mxu0 0.0
        %345 = vmatpush1.msra.mxu0 0.0
        %346 = vmatprep.subr.mxu0 0.0
        %347 = vmatpush1.msra.mxu0 0.0
        %348 = vmatprep.subr.mxu0 0.0
        %349 = vmatpush1.msra.mxu0 0.0
        %350 = vmatprep.subr.mxu0 0.0
        %351 = vmatpush1.msra.mxu0 0.0
        %352 = vmatprep.subr.mxu0 0.0
        %353 = vmatpush1.msra.mxu0 0.0
        %354 = vmatprep.subr.mxu0 0.0
        %355 = vmatpush1.msra.mxu0 0.0
        %356 = vmatprep.subr.mxu0 0.0
        %357 = vmatpush1.msra.mxu0 0.0
        %358 = vmatprep.subr.mxu0 0.0
        %359 = vmatpush1.msra.mxu0 0.0
        %360 = vmatprep.subr.mxu0 0.0
        %361 = vmatpush1.msra.mxu0 0.0
        %362 = vmatprep.subr.mxu0 0.0
        %363 = vmatpush1.msra.mxu0 0.0
        %364 = vmatprep.subr.mxu0 0.0
        %365 = vmatpush1.msra.mxu0 0.0
        %366 = vmatprep.subr.mxu0 0.0
        %367 = vmatpush1.msra.mxu0 0.0
        %368 = vmatprep.subr.mxu0 0.0
        %369 = vmatpush1.msra.mxu0 0.0
        %370 = vmatprep.subr.mxu0 0.0
        %371 = vmatpush1.msra.mxu0 0.0
        %372 = vmatprep.subr.mxu0 0.0
        %373 = vmatpush1.msra.mxu0 0.0
        %374 = vmatprep.subr.mxu0 0.0
        %375 = vmatpush1.msra.mxu0 0.0
        %376 = vmatprep.subr.mxu0 0.0
        %377 = vmatpush1.msra.mxu0 0.0
        %378 = vmatprep.subr.mxu0 0.0
        %379 = vmatpush1.msra.mxu0 0.0
        %380 = vmatprep.subr.mxu0 0.0
        %381 = vmatpush1.msra.mxu0 0.0
        %382 = vmatprep.subr.mxu0 0.0
        %383 = vmatpush1.msra.mxu0 0.0
        %384 = vmatprep.mubr.f32.mxu0 0.0
        %385 = vmatmul.mubr.f32.gmra.mrb[0].mxu0 %v297
        %v386 = vpop.f32.mrb[0].mxu0
        %v387 = vadd.f32 %v293, %v386
        %v388 = vpop.f32.mrb[0].mxu0
        %389 = vmatprep.mubr.f32.mxu0 0.0
        %390 = vmatmul.mubr.f32.gmra.mrb[0].mxu0 %v300
        %v391 = vpop.f32.mrb[0].mxu0
        %v392 = vadd.f32 %v293, %v391
        %v393 = vpop.f32.mrb[0].mxu0
        %394 = vmatprep.mubr.f32.mxu0 0.0
        %395 = vmatmul.mubr.f32.gmra.mrb[0].mxu0 %v303
        %v396 = vpop.f32.mrb[0].mxu0
        %v397 = vadd.f32 %v293, %v396
        %v398 = vpop.f32.mrb[0].mxu0
        %399 = vmatprep.mubr.f32.mxu0 0.0
        %400 = vmatmul.mubr.f32.gmra.mrb[0].mxu0 %v306
        %v401 = vpop.f32.mrb[0].mxu0
        %v402 = vadd.f32 %v293, %v401
        %v403 = vpop.f32.mrb[0].mxu0
        %404 = vmatprep.mubr.f32.mxu0 0.0
        %405 = vmatmul.mubr.f32.gmra.mrb[0].mxu0 %v309
        %v406 = vpop.f32.mrb[0].mxu0
        %v407 = vadd.f32 %v293, %v406
        %v408 = vpop.f32.mrb[0].mxu0
        %409 = vmatprep.mubr.f32.mxu0 0.0
        %410 = vmatmul.mubr.f32.gmra.mrb[0].mxu0 %v312
        %v411 = vpop.f32.mrb[0].mxu0
        %v412 = vadd.f32 %v293, %v411
        %v413 = vpop.f32.mrb[0].mxu0
        %414 = vmatprep.mubr.f32.mxu0 0.0
        %415 = vmatmul.mubr.f32.gmra.mrb[0].mxu0 %v315
        %v416 = vpop.f32.mrb[0].mxu0
        %v417 = vadd.f32 %v293, %v416
        %v418 = vpop.f32.mrb[0].mxu0
        %419 = vmatprep.mubr.f32.mxu0 0.0
        %420 = vmatmul.mubr.f32.gmra.mrb[0].mxu0 %v318
        %v421 = vpop.f32.mrb[0].mxu0
        %v422 = vadd.f32 %v293, %v421
        %v423 = vpop.f32.mrb[0].mxu0
        %424 = vdwg.mxu0
        %v425 = vld [vmem:[#allocation2] sm:$0xff]
        %v426 = vld [vmem:[#allocation2 + $0x8] sm:$0xff]
        %v427 = vld [vmem:[#allocation2 + $0x10] sm:$0xff]
        %v428 = vld [vmem:[#allocation2 + $0x18] sm:$0xff]
        %v429 = vmax.f32 %v387, 0.0
        %v430 = vmax.f32 %v392, 0.0
        %v431 = vmax.f32 %v397, 0.0
        %v432 = vmax.f32 %v402, 0.0
        %v433 = vmax.f32 %v407, 0.0
        %v434 = vmax.f32 %v412, 0.0
        %v435 = vmax.f32 %v417, 0.0
        %v436 = vmax.f32 %v422, 0.0
        %v437 = vld [vmem:[%s4] sm:$0xff]
        %v438 = vld [vmem:[%s4 + $0x8] sm:$0xff]
        %v439 = vld [vmem:[%s4 + $0x10] sm:$0xff]
        %v440 = vld [vmem:[%s4 + $0x18] sm:$0xff]
        %v441 = vld [vmem:[%s4 + $0x20] sm:$0xff]
        %v442 = vld [vmem:[%s4 + $0x28] sm:$0xff]
        %v443 = vld [vmem:[%s4 + $0x30] sm:$0xff]
        %v444 = vld [vmem:[%s4 + $0x38] sm:$0xff]
        %v445 = vld [vmem:[%s4 + $0x40] sm:$0xff]
        %v446 = vld [vmem:[%s4 + $0x48] sm:$0xff]
        %v447 = vld [vmem:[%s4 + $0x50] sm:$0xff]
        %v448 = vld [vmem:[%s4 + $0x58] sm:$0xff]
        %v449 = vld [vmem:[%s4 + $0x60] sm:$0xff]
        %v450 = vld [vmem:[%s4 + $0x68] sm:$0xff]
        %v451 = vld [vmem:[%s4 + $0x70] sm:$0xff]
        %v452 = vld [vmem:[%s4 + $0x78] sm:$0xff]
        %453 = vmatprep.subr.mxu0 0.0
        %454 = vmatpush1.msra.mxu0 %v437
        %455 = vmatprep.subr.mxu0 0.0
        %456 = vmatpush1.msra.mxu0 %v438
        %457 = vmatprep.subr.mxu0 0.0
        %458 = vmatpush1.msra.mxu0 %v439
        %459 = vmatprep.subr.mxu0 0.0
        %460 = vmatpush1.msra.mxu0 %v440
        %461 = vmatprep.subr.mxu0 0.0
        %462 = vmatpush1.msra.mxu0 %v441
        %463 = vmatprep.subr.mxu0 0.0
        %464 = vmatpush1.msra.mxu0 %v442
        %465 = vmatprep.subr.mxu0 0.0
        %466 = vmatpush1.msra.mxu0 %v443
        %467 = vmatprep.subr.mxu0 0.0
        %468 = vmatpush1.msra.mxu0 %v444
        %469 = vmatprep.subr.mxu0 0.0
        %470 = vmatpush1.msra.mxu0 %v445
        %471 = vmatprep.subr.mxu0 0.0
        %472 = vmatpush1.msra.mxu0 %v446
        %473 = vmatprep.subr.mxu0 0.0
        %474 = vmatpush1.msra.mxu0 %v447
        %475 = vmatprep.subr.mxu0 0.0
        %476 = vmatpush1.msra.mxu0 %v448
        %477 = vmatprep.subr.mxu0 0.0
        %478 = vmatpush1.msra.mxu0 %v449
        %479 = vmatprep.subr.mxu0 0.0
        %480 = vmatpush1.msra.mxu0 %v450
        %481 = vmatprep.subr.mxu0 0.0
        %482 = vmatpush1.msra.mxu0 %v451
        %483 = vmatprep.subr.mxu0 0.0
        %484 = vmatpush1.msra.mxu0 %v452
        %485 = vmatprep.subr.mxu0 0.0
        %486 = vmatpush1.msra.mxu0 0.0
        %487 = vmatprep.subr.mxu0 0.0
        %488 = vmatpush1.msra.mxu0 0.0
        %489 = vmatprep.subr.mxu0 0.0
        %490 = vmatpush1.msra.mxu0 0.0
        %491 = vmatprep.subr.mxu0 0.0
        %492 = vmatpush1.msra.mxu0 0.0
        %493 = vmatprep.subr.mxu0 0.0
        %494 = vmatpush1.msra.mxu0 0.0
        %495 = vmatprep.subr.mxu0 0.0
        %496 = vmatpush1.msra.mxu0 0.0
        %497 = vmatprep.subr.mxu0 0.0
        %498 = vmatpush1.msra.mxu0 0.0
        %499 = vmatprep.subr.mxu0 0.0
        %500 = vmatpush1.msra.mxu0 0.0
        %501 = vmatprep.subr.mxu0 0.0
        %502 = vmatpush1.msra.mxu0 0.0
        %503 = vmatprep.subr.mxu0 0.0
        %504 = vmatpush1.msra.mxu0 0.0
        %505 = vmatprep.subr.mxu0 0.0
        %506 = vmatpush1.msra.mxu0 0.0
        %507 = vmatprep.subr.mxu0 0.0
        %508 = vmatpush1.msra.mxu0 0.0
        %509 = vmatprep.subr.mxu0 0.0
        %510 = vmatpush1.msra.mxu0 0.0
        %511 = vmatprep.subr.mxu0 0.0
        %512 = vmatpush1.msra.mxu0 0.0
        %513 = vmatprep.subr.mxu0 0.0
        %514 = vmatpush1.msra.mxu0 0.0
        %515 = vmatprep.subr.mxu0 0.0
        %516 = vmatpush1.msra.mxu0 0.0
        %517 = vmatprep.mubr.f32.mxu0 0.0
        %518 = vmatmul.mubr.f32.gmra.mrb[0].mxu0 %v429
        %v519 = vpop.f32.mrb[0].mxu0
        %v520 = vadd.f32 0.0, %v519
        %v521 = vpop.f32.mrb[0].mxu0
        %522 = vmatprep.mubr.f32.mxu0 0.0
        %523 = vmatmul.mubr.f32.gmra.mrb[0].mxu0 %v430
        %v524 = vpop.f32.mrb[0].mxu0
        %v525 = vadd.f32 0.0, %v524
        %v526 = vpop.f32.mrb[0].mxu0
        %527 = vmatprep.mubr.f32.mxu0 0.0
        %528 = vmatmul.mubr.f32.gmra.mrb[0].mxu0 %v431
        %v529 = vpop.f32.mrb[0].mxu0
        %v530 = vadd.f32 0.0, %v529
        %v531 = vpop.f32.mrb[0].mxu0
        %532 = vmatprep.mubr.f32.mxu0 0.0
        %533 = vmatmul.mubr.f32.gmra.mrb[0].mxu0 %v432
        %v534 = vpop.f32.mrb[0].mxu0
        %v535 = vadd.f32 0.0, %v534
        %v536 = vpop.f32.mrb[0].mxu0
        %537 = vmatprep.mubr.f32.mxu0 0.0
        %538 = vmatmul.mubr.f32.gmra.mrb[0].mxu0 %v433
        %v539 = vpop.f32.mrb[0].mxu0
        %v540 = vadd.f32 0.0, %v539
        %v541 = vpop.f32.mrb[0].mxu0
        %542 = vmatprep.mubr.f32.mxu0 0.0
        %543 = vmatmul.mubr.f32.gmra.mrb[0].mxu0 %v434
        %v544 = vpop.f32.mrb[0].mxu0
        %v545 = vadd.f32 0.0, %v544
        %v546 = vpop.f32.mrb[0].mxu0
        %547 = vmatprep.mubr.f32.mxu0 0.0
        %548 = vmatmul.mubr.f32.gmra.mrb[0].mxu0 %v435
        %v549 = vpop.f32.mrb[0].mxu0
        %v550 = vadd.f32 0.0, %v549
        %v551 = vpop.f32.mrb[0].mxu0
        %552 = vmatprep.mubr.f32.mxu0 0.0
        %553 = vmatmul.mubr.f32.gmra.mrb[0].mxu0 %v436
        %v554 = vpop.f32.mrb[0].mxu0
        %v555 = vadd.f32 0.0, %v554
        %v556 = vpop.f32.mrb[0].mxu0
        %557 = vdwg.mxu0
        %v559 = vsel %vm295, %v268, 0
        %v562 = vsel %vm295, %v269, 0
        %v565 = vsel %vm295, %v270, 0
        %v568 = vsel %vm295, %v271, 0
        %v571 = vsel %vm295, %v272, 0
        %v574 = vsel %vm295, %v273, 0
        %v577 = vsel %vm295, %v274, 0
        %v580 = vsel %vm295, %v275, 0
        %582 = vmatprep.subr.mxu0 0.0
        %583 = vmatpush1.msra.mxu0 %v425
        %584 = vmatprep.subr.mxu0 0.0
        %585 = vmatpush1.msra.mxu0 %v426
        %586 = vmatprep.subr.mxu0 0.0
        %587 = vmatpush1.msra.mxu0 %v427
        %588 = vmatprep.subr.mxu0 0.0
        %589 = vmatpush1.msra.mxu0 %v428
        %590 = vmatprep.subr.mxu0 0.0
        %591 = vmatpush1.msra.mxu0 0.0
        %592 = vmatprep.subr.mxu0 0.0
        %593 = vmatpush1.msra.mxu0 0.0
        %594 = vmatprep.subr.mxu0 0.0
        %595 = vmatpush1.msra.mxu0 0.0
        %596 = vmatprep.subr.mxu0 0.0
        %597 = vmatpush1.msra.mxu0 0.0
        %598 = vmatprep.subr.mxu0 0.0
        %599 = vmatpush1.msra.mxu0 0.0
        %600 = vmatprep.subr.mxu0 0.0
        %601 = vmatpush1.msra.mxu0 0.0
        %602 = vmatprep.subr.mxu0 0.0
        %603 = vmatpush1.msra.mxu0 0.0
        %604 = vmatprep.subr.mxu0 0.0
        %605 = vmatpush1.msra.mxu0 0.0
        %606 = vmatprep.subr.mxu0 0.0
        %607 = vmatpush1.msra.mxu0 0.0
        %608 = vmatprep.subr.mxu0 0.0
        %609 = vmatpush1.msra.mxu0 0.0
        %610 = vmatprep.subr.mxu0 0.0
        %611 = vmatpush1.msra.mxu0 0.0
        %612 = vmatprep.subr.mxu0 0.0
        %613 = vmatpush1.msra.mxu0 0.0
        %614 = vmatprep.subr.mxu0 0.0
        %615 = vmatpush1.msra.mxu0 0.0
        %616 = vmatprep.subr.mxu0 0.0
        %617 = vmatpush1.msra.mxu0 0.0
        %618 = vmatprep.subr.mxu0 0.0
        %619 = vmatpush1.msra.mxu0 0.0
        %620 = vmatprep.subr.mxu0 0.0
        %621 = vmatpush1.msra.mxu0 0.0
        %622 = vmatprep.subr.mxu0 0.0
        %623 = vmatpush1.msra.mxu0 0.0
        %624 = vmatprep.subr.mxu0 0.0
        %625 = vmatpush1.msra.mxu0 0.0
        %626 = vmatprep.subr.mxu0 0.0
        %627 = vmatpush1.msra.mxu0 0.0
        %628 = vmatprep.subr.mxu0 0.0
        %629 = vmatpush1.msra.mxu0 0.0
        %630 = vmatprep.subr.mxu0 0.0
        %631 = vmatpush1.msra.mxu0 0.0
        %632 = vmatprep.subr.mxu0 0.0
        %633 = vmatpush1.msra.mxu0 0.0
        %634 = vmatprep.subr.mxu0 0.0
        %635 = vmatpush1.msra.mxu0 0.0
        %636 = vmatprep.subr.mxu0 0.0
        %637 = vmatpush1.msra.mxu0 0.0
        %638 = vmatprep.subr.mxu0 0.0
        %639 = vmatpush1.msra.mxu0 0.0
        %640 = vmatprep.subr.mxu0 0.0
        %641 = vmatpush1.msra.mxu0 0.0
        %642 = vmatprep.subr.mxu0 0.0
        %643 = vmatpush1.msra.mxu0 0.0
        %644 = vmatprep.subr.mxu0 0.0
        %645 = vmatpush1.msra.mxu0 0.0
        %646 = vmatprep.mubr.f32.mxu0 0.0
        %647 = vmatmul.mubr.f32.gmra.mrb[0].mxu0 %v559
        %v648 = vpop.f32.mrb[0].mxu0
        %v649 = vadd.f32 %v520, %v648
        %v650 = vpop.f32.mrb[0].mxu0
        %651 = vmatprep.mubr.f32.mxu0 0.0
        %652 = vmatmul.mubr.f32.gmra.mrb[0].mxu0 %v562
        %v653 = vpop.f32.mrb[0].mxu0
        %v654 = vadd.f32 %v525, %v653
        %v655 = vpop.f32.mrb[0].mxu0
        %656 = vmatprep.mubr.f32.mxu0 0.0
        %657 = vmatmul.mubr.f32.gmra.mrb[0].mxu0 %v565
        %v658 = vpop.f32.mrb[0].mxu0
        %v659 = vadd.f32 %v530, %v658
        %v660 = vpop.f32.mrb[0].mxu0
        %661 = vmatprep.mubr.f32.mxu0 0.0
        %662 = vmatmul.mubr.f32.gmra.mrb[0].mxu0 %v568
        %v663 = vpop.f32.mrb[0].mxu0
        %v664 = vadd.f32 %v535, %v663
        %v665 = vpop.f32.mrb[0].mxu0
        %666 = vmatprep.mubr.f32.mxu0 0.0
        %667 = vmatmul.mubr.f32.gmra.mrb[0].mxu0 %v571
        %v668 = vpop.f32.mrb[0].mxu0
        %v669 = vadd.f32 %v540, %v668
        %v670 = vpop.f32.mrb[0].mxu0
        %671 = vmatprep.mubr.f32.mxu0 0.0
        %672 = vmatmul.mubr.f32.gmra.mrb[0].mxu0 %v574
        %v673 = vpop.f32.mrb[0].mxu0
        %v674 = vadd.f32 %v545, %v673
        %v675 = vpop.f32.mrb[0].mxu0
        %676 = vmatprep.mubr.f32.mxu0 0.0
        %677 = vmatmul.mubr.f32.gmra.mrb[0].mxu0 %v577
        %v678 = vpop.f32.mrb[0].mxu0
        %v679 = vadd.f32 %v550, %v678
        %v680 = vpop.f32.mrb[0].mxu0
        %681 = vmatprep.mubr.f32.mxu0 0.0
        %682 = vmatmul.mubr.f32.gmra.mrb[0].mxu0 %v580
        %v683 = vpop.f32.mrb[0].mxu0
        %v684 = vadd.f32 %v555, %v683
        %v685 = vpop.f32.mrb[0].mxu0
        %686 = vdwg.mxu0
        %v687 = vld [vmem:[%s5] sm:$0x1]
        %v689 = vlaneseq
        %v690 = vshrl.u32 %v689, 7
        %v691 = vsub.s32 0, %v690
        %v692 = vrot.slane %v687, %v691
        %v694 = vadd.f32 %v649, %v692
        %v695 = vadd.f32 %v654, %v692
        %v696 = vadd.f32 %v659, %v692
        %v697 = vadd.f32 %v664, %v692
        %v698 = vadd.f32 %v669, %v692
        %v699 = vadd.f32 %v674, %v692
        %v700 = vadd.f32 %v679, %v692
        %v701 = vadd.f32 %v684, %v692
        %702 = vst [vmem:[%s260] sm:$0xff] %v694
        %703 = vst [vmem:[%s260 + $0x8] sm:$0xff] %v695
        %704 = vst [vmem:[%s260 + $0x10] sm:$0xff] %v696
        %705 = vst [vmem:[%s260 + $0x18] sm:$0xff] %v697
        %706 = vst [vmem:[%s260 + $0x20] sm:$0xff] %v698
        %707 = vst [vmem:[%s260 + $0x28] sm:$0xff] %v699
        %708 = vst [vmem:[%s260 + $0x30] sm:$0xff] %v700
        %709 = vst [vmem:[%s260 + $0x38] sm:$0xff] %v701
        %s710 = sand.u32 %s160, 1
        %s711 = scalar_lea.sflag [#allocation4], %s710
        %s712 = sand.u32 %s160, 1
        %s713 = smul.addr %s712, 64
        %s714 = scalar_lea.vmem [#allocation5], %s713
        // Predicated region
        $region49: #{tpu_custom_call.1} parent=43 // pred_check
          %p715 = pneg %p170
        $region50: #{tpu_custom_call.1} parent=43 // pred_check_branch
          %717 = sbr.rel (%p715) target = $region52
        $region51: #{tpu_custom_call.1} parent=43 // pred_region
          %s718 = smul.u32 8, %s21
          %s720 = ssub.s32 1024, 1024
          %721 = vsyncadd %s711, %s720
          %s722 = smul.addr %s718, 128
          %s723 = scalar_lea.hbm %s6, %s722
          %s724 = sshll.u32 %s714, 4
          %s725 = int_to_ptr.vmem [resolvable:$true] %s724
          %730 = dma.vmem_to_hbm [thread:$0]  %s725, 1024, %s723, %s711, 128, 128, 8
        $region52: #{tpu_custom_call.1} parent=43 // pred_fallthru
          _
      $region44: #{tpu_custom_call.1} parent=5 // pred_fallthru
        _
      %p731 = scmp.le.s32.totalorder 2, %s16
      // Predicated region
      $region53: #{tpu_custom_call.1} parent=5 // pred_check
        %p732 = pneg %p731
      $region54: #{tpu_custom_call.1} parent=5 // pred_check_branch
        %734 = sbr.rel (%p732) target = $region56
      $region55: #{tpu_custom_call.1} parent=5 // pred_region
        %s735 = ssub.s32 %s16, 2
        // Predicated region
        $region57: #{tpu_custom_call.1} parent=55 // pred_check
          %p736 = pneg %p176
        $region58: #{tpu_custom_call.1} parent=55 // pred_check_branch
          %738 = sbr.rel (%p736) target = $region60
        $region59: #{tpu_custom_call.1} parent=55 // pred_region
          %s739 = sand.u32 %s161, 1
          %s740 = scalar_lea.sflag [#allocation4], %s739
          %s741 = sand.u32 %s161, 1
          %s742 = smul.addr %s741, 64
          %s743 = scalar_lea.vmem [#allocation5], %s742
          %744 = dma.done %s740, 1024
        $region60: #{tpu_custom_call.1} parent=55 // pred_fallthru
          _
      $region56: #{tpu_custom_call.1} parent=5 // pred_fallthru
        _
    $region6: #{tpu_custom_call.1} parent=1 // loop_footer
      %s20 = sadd.s32 1, %s16
    $region7: #{tpu_custom_call.1} parent=1 // loop_footer_branch
      %15 = sbr.rel target = $region3
    $region8: #{tpu_custom_call.1} parent=1 // loop_exit
      _
    %745 = vsyncpa [#allocation3], 1
    %s746 = scalar_lea.sflag [#allocation3], 1
    %747 = vsyncpa %s746, 1
    %748 = vsyncpa [#allocation4], 1
    %s749 = scalar_lea.sflag [#allocation4], 1
    %750 = vsyncpa %s749, 1

</llo_original>
